<compile_context>
chip_gen: v7x
topology: tpu7x:2x2x1
jax: 0.10.0
libtpu: 0.0.40
codegen_flags: <defaults>
</compile_context>

<pallas_src>
import functools

import jax
import jax.numpy as jnp
from jax.experimental import pallas as pl
from jax.experimental.pallas import tpu as pltpu


def _round_up(x, m):
    return ((x + m - 1) // m) * m


def _cdiv(a, b):
    return (a + b - 1) // b


def _choose_tb(B):
    """Lane-dense batch tile (multiple of 128).

    Big enough to amortize the ~600-cycle per-grid-step overhead (target ~4
    steps, min 1024 once the batch allows), capped at 2048 so the f32 (H, TB)
    intermediates stay well inside v5e's default scoped VMEM, and reduced if
    needed so the grid has >= 2 steps (megacore split on v7x).
    """
    Bp = _round_up(max(B, 1), 128)
    if Bp <= 1024:
        tb = Bp
    else:
        tb = min(max(_round_up(_cdiv(Bp, 4), 128), 1024), 2048)
    if Bp > 512 and _cdiv(Bp, tb) < 2:
        tb = _round_up(_cdiv(Bp, 2), 128)
    return tb


def _bf16_supported():
    """Packed-bf16 VALU/EUP path is only profitable/available on v6e / v7x."""
    try:
        kind = jax.devices()[0].device_kind.lower()
    except Exception:
        return False
    if "tpu" not in kind:
        return False
    return not any(old in kind for old in ("v2", "v3", "v4", "v5"))


def _make_kernel(bf16_compute: bool):
    def decoder_kernel(zt_ref, w1_ref, b1_ref, w2_ref, b2_ref, o_ref):
        # zt_ref: (latent, TB)  batch on lanes (lane-dense)
        # w1_ref: (H, latent)   == PyTorch (out_features, in_features) layout
        # b1_ref: (H, 1)
        # w2_ref: (H, 1)        == transpose of PyTorch (1, H) layer-2 weight
        # b2_ref: (1, 1) in SMEM (scalar)
        # o_ref : (1, TB)       lane-dense output row
        latent = zt_ref.shape[0]

        # ---- Layer 1 (VPU): h^T = sum_k w1[:, k] (x) z^T[k, :] + b1 ----
        acc = w1_ref[:, 0:1] * zt_ref[0:1, :] + b1_ref[...]
        for k in range(1, latent):  # static unroll (latent == 2)
            acc = acc + w1_ref[:, k : k + 1] * zt_ref[k : k + 1, :]

        if bf16_compute:
            # v6e/v7x: packed-bf16 tanh (halves EUP pushes) and bf16 layer-2
            # multiply (halves VALU work / vreg footprint); f32 accumulate.
            h = jnp.tanh(acc.astype(jnp.bfloat16))
            prod = h * w2_ref[...].astype(jnp.bfloat16)
            out = jnp.sum(prod.astype(jnp.float32), axis=0, keepdims=True)
        else:
            # v5e (no bf16 VPU/EUP) and bit-stable path.
            h = jnp.tanh(acc)
            out = jnp.sum(h * w2_ref[...], axis=0, keepdims=True)

        o_ref[...] = (out + b2_ref[0, 0]).astype(o_ref.dtype)
        # TODO(synk): if the bundle dump shows vld/vst saturation from unfused
        # (H, TB) temporaries, restructure as lax.fori_loop(unroll=True) over
        # H-chunks accumulating into an (8, TB) partial sum; likewise, batch 8
        # lane-tiles per grid step into an (8, TB) output block if the (1, TB)
        # writeback shows up exposed in xprof.

    return decoder_kernel


def _decoder_pallas(zt, w1, b1, w2, b2, *, tb, bf16_compute):
    """zt: (latent, Bp) with Bp % tb == 0.  Returns (1, Bp) f32."""
    latent, Bp = zt.shape
    H = w1.shape[0]
    G = Bp // tb

    cost = pl.CostEstimate(
        flops=Bp * H * (2 * latent + 2),
        transcendentals=Bp * H,
        bytes_accessed=4 * (latent * Bp + Bp + H * latent + 2 * H + 1),
    )

    return pl.pallas_call(
        _make_kernel(bf16_compute),
        out_shape=jax.ShapeDtypeStruct((1, Bp), jnp.float32),
        grid=(G,),
        in_specs=[
            pl.BlockSpec((latent, tb), lambda i: (0, i)),       # z^T batch tile
            pl.BlockSpec((H, latent), lambda i: (0, 0)),        # w1 resident
            pl.BlockSpec((H, 1), lambda i: (0, 0)),             # b1 resident
            pl.BlockSpec((H, 1), lambda i: (0, 0)),             # w2 resident
            pl.BlockSpec(memory_space=pltpu.MemorySpace.SMEM),  # b2 scalar
        ],
        out_specs=pl.BlockSpec((1, tb), lambda i: (0, i)),      # lane-dense row
        compiler_params=pltpu.CompilerParams(
            # TODO(synk): if xprof shows only one v7x TensorCore busy, switch
            # to an explicit leading core axis with pltpu.CORE_PARALLEL.
            dimension_semantics=("parallel",)
        ),
        cost_estimate=cost,
    )(zt, w1, b1, w2, b2)


@functools.partial(jax.jit, static_argnames=("bf16_compute",))
def _decoder_forward_batch_major(z, w1, b1, w2, b2, *, bf16_compute):
    B, _ = z.shape
    tb = _choose_tb(B)
    Bp = _round_up(B, tb)
    # Single fused pad+transpose copy under jit (feature-major staging avoids
    # even this — see decoder_forward_feature_major).
    zt = jnp.pad(z, ((0, Bp - B), (0, 0))).T  # (latent, Bp)
    out = _decoder_pallas(zt, w1, b1, w2, b2, tb=tb, bf16_compute=bf16_compute)
    return out[0, :B].reshape(B, 1)


def decoder_forward(z, w1, b1, w2, b2, bf16_compute=None):
    """z: (B, latent) f32. Returns (B, 1) f32, matching the PyTorch Decoder."""
    if bf16_compute is None:
        bf16_compute = _bf16_supported()
    return _decoder_forward_batch_major(z, w1, b1, w2, b2,
                                        bf16_compute=bool(bf16_compute))


@functools.partial(jax.jit, static_argnames=("bf16_compute",))
def decoder_forward_feature_major(zt, w1, b1, w2, b2, *, bf16_compute=False):
    """zt: (latent, B) feature-major input — no wrapper transpose needed."""
    _, B = zt.shape
    tb = _choose_tb(B)
    Bp = _round_up(B, tb)
    if Bp != B:
        zt = jnp.pad(zt, ((0, 0), (0, Bp - B)))
    out = _decoder_pallas(zt, w1, b1, w2, b2, tb=tb, bf16_compute=bf16_compute)
    return out[0, :B].reshape(B, 1)


def init_params(key, latent_dim=2, hidden=200):
    # Mimic PyTorch nn.Linear default init: U(-1/sqrt(fan_in), 1/sqrt(fan_in)).
    k1, k2, k3, k4 = jax.random.split(key, 4)
    bound1 = 1.0 / jnp.sqrt(float(latent_dim))
    bound2 = 1.0 / jnp.sqrt(float(hidden))
    # Kernel layouts: w1 (H, latent) == PyTorch (out, in); b1/w2 as columns.
    w1 = jax.random.uniform(k1, (hidden, latent_dim), jnp.float32, -bound1, bound1)
    b1 = jax.random.uniform(k2, (hidden, 1), jnp.float32, -bound1, bound1)
    w2 = jax.random.uniform(k3, (hidden, 1), jnp.float32, -bound2, bound2)
    b2 = jax.random.uniform(k4, (1, 1), jnp.float32, -bound2, bound2)
    return w1, b1, w2, b2


if __name__ == "__main__":
    key = jax.random.PRNGKey(0)
    k_z, k_z2, k_p = jax.random.split(key, 3)

    latent_dim, hidden = 2, 200
    w1, b1, w2, b2 = init_params(k_p, latent_dim, hidden)

    def reference(z):
        # Pure-JAX f32 reference identical to PyTorch: Linear -> Tanh -> Linear.
        hp = jnp.dot(z, w1.T, precision=jax.lax.Precision.HIGHEST) + b1.T
        return jnp.dot(jnp.tanh(hp), w2, precision=jax.lax.Precision.HIGHEST) + b2

    # 1) Small batch (module-scale), f32 path, single grid step.
    B = 8
    z = jax.random.normal(k_z, (B, latent_dim), jnp.float32)
    out = jax.block_until_ready(decoder_forward(z, w1, b1, w2, b2, bf16_compute=False))
    assert out.shape == (B, 1)
    assert jnp.allclose(out, reference(z), atol=1e-5, rtol=1e-5), "mismatch (B=8)"

    # 2) Multi-step, pipelined, megacore-splittable grid (G=2), f32 path.
    B2 = 1024
    z2 = jax.random.normal(k_z2, (B2, latent_dim), jnp.float32)
    out2 = jax.block_until_ready(decoder_forward(z2, w1, b1, w2, b2, bf16_compute=False))
    assert out2.shape == (B2, 1)
    assert jnp.allclose(out2, reference(z2), atol=1e-5, rtol=1e-5), "mismatch (B=1024)"

    # 3) Feature-major entry point (no wrapper transpose) + ragged batch (padding).
    B3 = 1000
    z3 = z2[:B3]
    out3 = jax.block_until_ready(
        decoder_forward_feature_major(z3.T, w1, b1, w2, b2, bf16_compute=False))
    assert out3.shape == (B3, 1)
    assert jnp.allclose(out3, reference(z3), atol=1e-5, rtol=1e-5), "mismatch (B=1000, fm)"

    # 4) Packed-bf16 intermediate path (v6e / v7x only); relaxed tolerance.
    if _bf16_supported():
        out4 = jax.block_until_ready(
            decoder_forward(z2, w1, b1, w2, b2, bf16_compute=True))
        assert out4.shape == (B2, 1)
        assert jnp.allclose(out4, reference(z2), atol=5e-2, rtol=5e-2), "mismatch (bf16)"

    print("KERNEL_OK")
</pallas_src>

<mosaic_0001>
module attributes {stable_mosaic.version = 11 : i64} {
  func.func @decoder_kernel(%arg0: i32, %arg1: memref<2x128xf32, #tpu.memory_space<vmem>>, %arg2: memref<200x2xf32, #tpu.memory_space<vmem>>, %arg3: memref<200x1xf32, #tpu.memory_space<vmem>>, %arg4: memref<200x1xf32, #tpu.memory_space<vmem>>, %arg5: memref<1x1xf32, #tpu.memory_space<smem>>, %arg6: memref<1x128xf32, #tpu.memory_space<vmem>>) attributes {dimension_semantics = [#tpu.dimension_semantics<parallel>], iteration_bounds = array<i64: 1>, scalar_prefetch = 0 : i64, scratch_operands = 0 : i64, tpu.core_type = #tpu.core_type<tc>, window_params = [{transform_indices = @transform_0, window_bounds = array<i64: 2, 128>}, {pipeline_mode = #tpu.pipeline_mode<synchronous>, transform_indices = @transform_1, window_bounds = array<i64: 200, 2>}, {pipeline_mode = #tpu.pipeline_mode<synchronous>, transform_indices = @transform_2, window_bounds = array<i64: 200, 1>}, {pipeline_mode = #tpu.pipeline_mode<synchronous>, transform_indices = @transform_3, window_bounds = array<i64: 200, 1>}, {transform_indices = @transform_4, window_bounds = array<i64: 1, 1>}, {transform_indices = @transform_5, window_bounds = array<i64: 1, 128>}]} {
    %c0 = arith.constant 0 : index
    %c0_0 = arith.constant 0 : index
    %0 = vector.load %arg2[%c0, %c0_0] : memref<200x2xf32, #tpu.memory_space<vmem>>, vector<200x1xf32>
    %c0_1 = arith.constant 0 : index
    %c0_2 = arith.constant 0 : index
    %1 = vector.load %arg1[%c0_1, %c0_2] : memref<2x128xf32, #tpu.memory_space<vmem>>, vector<1x128xf32>
    %2 = vector.broadcast %0 : vector<200x1xf32> to vector<200x128xf32>
    %3 = vector.broadcast %1 : vector<1x128xf32> to vector<200x128xf32>
    %4 = arith.mulf %2, %3 : vector<200x128xf32>
    %c0_3 = arith.constant 0 : index
    %c0_4 = arith.constant 0 : index
    %5 = vector.load %arg3[%c0_3, %c0_4] : memref<200x1xf32, #tpu.memory_space<vmem>>, vector<200x1xf32>
    %6 = vector.broadcast %5 : vector<200x1xf32> to vector<200x128xf32>
    %7 = arith.addf %4, %6 : vector<200x128xf32>
    %c0_5 = arith.constant 0 : index
    %c1 = arith.constant 1 : index
    %8 = vector.load %arg2[%c0_5, %c1] : memref<200x2xf32, #tpu.memory_space<vmem>>, vector<200x1xf32>
    %c1_6 = arith.constant 1 : index
    %c0_7 = arith.constant 0 : index
    %9 = vector.load %arg1[%c1_6, %c0_7] : memref<2x128xf32, #tpu.memory_space<vmem>>, vector<1x128xf32>
    %10 = vector.broadcast %8 : vector<200x1xf32> to vector<200x128xf32>
    %11 = vector.broadcast %9 : vector<1x128xf32> to vector<200x128xf32>
    %12 = arith.mulf %10, %11 : vector<200x128xf32>
    %13 = arith.addf %7, %12 : vector<200x128xf32>
    %14 = math.tanh %13 : vector<200x128xf32>
    %c0_8 = arith.constant 0 : index
    %c0_9 = arith.constant 0 : index
    %15 = vector.load %arg4[%c0_8, %c0_9] : memref<200x1xf32, #tpu.memory_space<vmem>>, vector<200x1xf32>
    %16 = vector.broadcast %15 : vector<200x1xf32> to vector<200x128xf32>
    %17 = arith.mulf %14, %16 : vector<200x128xf32>
    %cst = arith.constant dense<0.000000e+00> : vector<128xf32>
    %18 = vector.multi_reduction <add>, %17, %cst [0] : vector<200x128xf32> to vector<128xf32>
    %19 = vector.shape_cast %18 : vector<128xf32> to vector<1x128xf32>
    %c0_10 = arith.constant 0 : index
    %c0_11 = arith.constant 0 : index
    %20 = memref.load %arg5[%c0_10, %c0_11] : memref<1x1xf32, #tpu.memory_space<smem>>
    %21 = vector.broadcast %20 : f32 to vector<1x128xf32>
    %22 = arith.addf %19, %21 : vector<1x128xf32>
    %c0_12 = arith.constant 0 : index
    %c0_13 = arith.constant 0 : index
    %23 = vector.load %arg6[%c0_12, %c0_13] : memref<1x128xf32, #tpu.memory_space<vmem>>, vector<1x128xf32>
    tpu.vector_store %arg6[%c0_12, %c0_13], %22 {strides = array<i32>} : memref<1x128xf32, #tpu.memory_space<vmem>>, vector<1x128xf32>,
    return
  }
  func.func @transform_0(%arg0: i32) -> (i32, i32) {
    %c0_i32 = arith.constant 0 : i32
    %c0_i32_0 = arith.constant 0 : i32
    return %c0_i32, %arg0 : i32, i32
  }
  func.func @transform_1(%arg0: i32) -> (i32, i32) {
    %c0_i32 = arith.constant 0 : i32
    %c0_i32_0 = arith.constant 0 : i32
    %c0_i32_1 = arith.constant 0 : i32
    return %c0_i32, %c0_i32_0 : i32, i32
  }
  func.func @transform_2(%arg0: i32) -> (i32, i32) {
    %c0_i32 = arith.constant 0 : i32
    %c0_i32_0 = arith.constant 0 : i32
    %c0_i32_1 = arith.constant 0 : i32
    return %c0_i32, %c0_i32_0 : i32, i32
  }
  func.func @transform_3(%arg0: i32) -> (i32, i32) {
    %c0_i32 = arith.constant 0 : i32
    %c0_i32_0 = arith.constant 0 : i32
    %c0_i32_1 = arith.constant 0 : i32
    return %c0_i32, %c0_i32_0 : i32, i32
  }
  func.func @transform_4(%arg0: i32) -> (i32, i32) {
    %c0_i32 = arith.constant 0 : i32
    %c0_i32_0 = arith.constant 0 : i32
    %c0_i32_1 = arith.constant 0 : i32
    return %c0_i32, %c0_i32_0 : i32, i32
  }
  func.func @transform_5(%arg0: i32) -> (i32, i32) {
    %c0_i32 = arith.constant 0 : i32
    %c0_i32_0 = arith.constant 0 : i32
    return %c0_i32, %arg0 : i32, i32
  }
}

</mosaic_0001>

<llo_original>
// kernel: _decoder_forward_batch_major.1
$region0: #{_decoder_forward_batch_major.1}
  #allocation0 [shape = 'u32[]', space=smem, size = 0x4, offset = 0x4, fixed_abs, tag = 'smem constant byte address 0x4 - core index']
  #allocation1 [shape = 'u32[144,128]{1,0:T(1,128)}', space=vmem, size = 0x12000, scoped, tag = 'internal scratch']
  #allocation2 [shape = 'f32[1,1]{1,0:T(1,128)S(6)}', space=smem, size = 0x200, scoped, tag = 'scoped memory for _decoder_forward_batch_major.1']
  %s0 = inlined_call_operand.vmem [shape: f32[2,128], index: 0, kind: input, shape index: {}]
  %s1 = inlined_call_operand.vmem [shape: f32[200,2], index: 1, kind: input, shape index: {}]
  %s2 = inlined_call_operand.vmem [shape: f32[200,1], index: 2, kind: input, shape index: {}]
  %s3 = inlined_call_operand.vmem [shape: f32[200,1], index: 3, kind: input, shape index: {}]
  %s4 = inlined_call_operand.<no memory space> [shape: f32[1,1], index: 4, kind: input, shape index: {}]
  %s5 = inlined_call_operand.vmem [shape: f32[1,128], index: 5, kind: output, shape index: {}]
  %s6 = sld [smem:[#allocation0]]
  $region30: #{_decoder_forward_batch_major.1} parent=0
    _
  %s8 = ssub.s32 1, %s6
  %s9 = scalar_select 0, %s8, %s6
  %10 = sst [smem:[#allocation2]] %s4
  // Predicated region
  $region2: #{_decoder_forward_batch_major.1} parent=0 // pred_check
    _
  $region3: #{_decoder_forward_batch_major.1} parent=0 // pred_check_branch
    %12 = sbr.rel (0) target = $region5
  $region4: #{_decoder_forward_batch_major.1} parent=0 // pred_region
    _
  $region5: #{_decoder_forward_batch_major.1} parent=0 // pred_fallthru
    _
  // Predicated region
  $region6: #{_decoder_forward_batch_major.1} parent=0 // pred_check
    _
  $region7: #{_decoder_forward_batch_major.1} parent=0 // pred_check_branch
    %14 = sbr.rel (0) target = $region9
  $region8: #{_decoder_forward_batch_major.1} parent=0 // pred_region
    _
  $region9: #{_decoder_forward_batch_major.1} parent=0 // pred_fallthru
    _
  // Predicated region
  $region10: #{_decoder_forward_batch_major.1} parent=0 // pred_check
    _
  $region11: #{_decoder_forward_batch_major.1} parent=0 // pred_check_branch
    %16 = sbr.rel (0) target = $region13
  $region12: #{_decoder_forward_batch_major.1} parent=0 // pred_region
    _
  $region13: #{_decoder_forward_batch_major.1} parent=0 // pred_fallthru
    _
  // Predicated region
  $region14: #{_decoder_forward_batch_major.1} parent=0 // pred_check
    _
  $region15: #{_decoder_forward_batch_major.1} parent=0 // pred_check_branch
    %18 = sbr.rel (0) target = $region17
  $region16: #{_decoder_forward_batch_major.1} parent=0 // pred_region
    _
  $region17: #{_decoder_forward_batch_major.1} parent=0 // pred_fallthru
    _
  // Predicated region
  $region18: #{_decoder_forward_batch_major.1} parent=0 // pred_check
    _
  $region19: #{_decoder_forward_batch_major.1} parent=0 // pred_check_branch
    %20 = sbr.rel (0) target = $region21
  $region20: #{_decoder_forward_batch_major.1} parent=0 // pred_region
    _
  $region21: #{_decoder_forward_batch_major.1} parent=0 // pred_fallthru
    _
  %v21 = vld [vmem:[%s1] sm:$0xff]
  %v22 = vld [vmem:[%s1 + $0x8] sm:$0xff]
  %v23 = vld [vmem:[%s1 + $0x10] sm:$0xff]
  %v24 = vld [vmem:[%s1 + $0x18] sm:$0xff]
  %v25 = vld [vmem:[%s1 + $0x20] sm:$0xff]
  %v26 = vld [vmem:[%s1 + $0x28] sm:$0xff]
  %v27 = vld [vmem:[%s1 + $0x30] sm:$0xff]
  %v28 = vld [vmem:[%s1 + $0x38] sm:$0xff]
  %v29 = vld [vmem:[%s1 + $0x40] sm:$0xff]
  %v30 = vld [vmem:[%s1 + $0x48] sm:$0xff]
  %v31 = vld [vmem:[%s1 + $0x50] sm:$0xff]
  %v32 = vld [vmem:[%s1 + $0x58] sm:$0xff]
  %v33 = vld [vmem:[%s1 + $0x60] sm:$0xff]
  %v34 = vld [vmem:[%s1 + $0x68] sm:$0xff]
  %v35 = vld [vmem:[%s1 + $0x70] sm:$0xff]
  %v36 = vld [vmem:[%s1 + $0x78] sm:$0xff]
  %v37 = vld [vmem:[%s1 + $0x80] sm:$0xff]
  %v38 = vld [vmem:[%s1 + $0x88] sm:$0xff]
  %v39 = vld [vmem:[%s1 + $0x90] sm:$0xff]
  %v40 = vld [vmem:[%s1 + $0x98] sm:$0xff]
  %v41 = vld [vmem:[%s1 + $0xa0] sm:$0xff]
  %v42 = vld [vmem:[%s1 + $0xa8] sm:$0xff]
  %v43 = vld [vmem:[%s1 + $0xb0] sm:$0xff]
  %v44 = vld [vmem:[%s1 + $0xb8] sm:$0xff]
  %v45 = vld [vmem:[%s1 + $0xc0] sm:$0xff]
  %v46 = vld [vmem:[%s0] sm:$0x1]
  %48 = vset.pattern.permute.xlu0 0
  %49 = vperm.xlu0 %48, %v21
  %v50 = vpop.permute.xlu0 %49
  %53 = vset.pattern.permute.xlu0 0
  %54 = vperm.xlu0 %53, %v22
  %v55 = vpop.permute.xlu0 %54
  %58 = vset.pattern.permute.xlu0 0
  %59 = vperm.xlu0 %58, %v23
  %v60 = vpop.permute.xlu0 %59
  %63 = vset.pattern.permute.xlu0 0
  %64 = vperm.xlu0 %63, %v24
  %v65 = vpop.permute.xlu0 %64
  %68 = vset.pattern.permute.xlu0 0
  %69 = vperm.xlu0 %68, %v25
  %v70 = vpop.permute.xlu0 %69
  %73 = vset.pattern.permute.xlu0 0
  %74 = vperm.xlu0 %73, %v26
  %v75 = vpop.permute.xlu0 %74
  %78 = vset.pattern.permute.xlu0 0
  %79 = vperm.xlu0 %78, %v27
  %v80 = vpop.permute.xlu0 %79
  %83 = vset.pattern.permute.xlu0 0
  %84 = vperm.xlu0 %83, %v28
  %v85 = vpop.permute.xlu0 %84
  %88 = vset.pattern.permute.xlu0 0
  %89 = vperm.xlu0 %88, %v29
  %v90 = vpop.permute.xlu0 %89
  %93 = vset.pattern.permute.xlu0 0
  %94 = vperm.xlu0 %93, %v30
  %v95 = vpop.permute.xlu0 %94
  %98 = vset.pattern.permute.xlu0 0
  %99 = vperm.xlu0 %98, %v31
  %v100 = vpop.permute.xlu0 %99
  %103 = vset.pattern.permute.xlu0 0
  %104 = vperm.xlu0 %103, %v32
  %v105 = vpop.permute.xlu0 %104
  %108 = vset.pattern.permute.xlu0 0
  %109 = vperm.xlu0 %108, %v33
  %v110 = vpop.permute.xlu0 %109
  %113 = vset.pattern.permute.xlu0 0
  %114 = vperm.xlu0 %113, %v34
  %v115 = vpop.permute.xlu0 %114
  %118 = vset.pattern.permute.xlu0 0
  %119 = vperm.xlu0 %118, %v35
  %v120 = vpop.permute.xlu0 %119
  %123 = vset.pattern.permute.xlu0 0
  %124 = vperm.xlu0 %123, %v36
  %v125 = vpop.permute.xlu0 %124
  %128 = vset.pattern.permute.xlu0 0
  %129 = vperm.xlu0 %128, %v37
  %v130 = vpop.permute.xlu0 %129
  %133 = vset.pattern.permute.xlu0 0
  %134 = vperm.xlu0 %133, %v38
  %v135 = vpop.permute.xlu0 %134
  %138 = vset.pattern.permute.xlu0 0
  %139 = vperm.xlu0 %138, %v39
  %v140 = vpop.permute.xlu0 %139
  %143 = vset.pattern.permute.xlu0 0
  %144 = vperm.xlu0 %143, %v40
  %v145 = vpop.permute.xlu0 %144
  %148 = vset.pattern.permute.xlu0 0
  %149 = vperm.xlu0 %148, %v41
  %v150 = vpop.permute.xlu0 %149
  %153 = vset.pattern.permute.xlu0 0
  %154 = vperm.xlu0 %153, %v42
  %v155 = vpop.permute.xlu0 %154
  %158 = vset.pattern.permute.xlu0 0
  %159 = vperm.xlu0 %158, %v43
  %v160 = vpop.permute.xlu0 %159
  %163 = vset.pattern.permute.xlu0 0
  %164 = vperm.xlu0 %163, %v44
  %v165 = vpop.permute.xlu0 %164
  %168 = vset.pattern.permute.xlu0 0
  %169 = vperm.xlu0 %168, %v45
  %v170 = vpop.permute.xlu0 %169
  %v172 = vlaneseq
  %v173 = vshrl.u32 %v172, 7
  %v174 = vsub.s32 0, %v173
  %v175 = vrot.slane %v46, %v174
  %v176 = vmul.f32 %v50, %v175
  %v177 = vmul.f32 %v55, %v175
  %v178 = vmul.f32 %v60, %v175
  %v179 = vmul.f32 %v65, %v175
  %v180 = vmul.f32 %v70, %v175
  %v181 = vmul.f32 %v75, %v175
  %v182 = vmul.f32 %v80, %v175
  %v183 = vmul.f32 %v85, %v175
  %v184 = vmul.f32 %v90, %v175
  %v185 = vmul.f32 %v95, %v175
  %v186 = vmul.f32 %v100, %v175
  %v187 = vmul.f32 %v105, %v175
  %v188 = vmul.f32 %v110, %v175
  %v189 = vmul.f32 %v115, %v175
  %v190 = vmul.f32 %v120, %v175
  %v191 = vmul.f32 %v125, %v175
  %v192 = vmul.f32 %v130, %v175
  %v193 = vmul.f32 %v135, %v175
  %v194 = vmul.f32 %v140, %v175
  %v195 = vmul.f32 %v145, %v175
  %v196 = vmul.f32 %v150, %v175
  %v197 = vmul.f32 %v155, %v175
  %v198 = vmul.f32 %v160, %v175
  %v199 = vmul.f32 %v165, %v175
  %v200 = vmul.f32 %v170, %v175
  %v201 = vld [vmem:[%s2] sm:$0xff]
  %v202 = vld [vmem:[%s2 + $0x8] sm:$0xff]
  %v203 = vld [vmem:[%s2 + $0x10] sm:$0xff]
  %v204 = vld [vmem:[%s2 + $0x18] sm:$0xff]
  %v205 = vld [vmem:[%s2 + $0x20] sm:$0xff]
  %v206 = vld [vmem:[%s2 + $0x28] sm:$0xff]
  %v207 = vld [vmem:[%s2 + $0x30] sm:$0xff]
  %v208 = vld [vmem:[%s2 + $0x38] sm:$0xff]
  %v209 = vld [vmem:[%s2 + $0x40] sm:$0xff]
  %v210 = vld [vmem:[%s2 + $0x48] sm:$0xff]
  %v211 = vld [vmem:[%s2 + $0x50] sm:$0xff]
  %v212 = vld [vmem:[%s2 + $0x58] sm:$0xff]
  %v213 = vld [vmem:[%s2 + $0x60] sm:$0xff]
  %v214 = vld [vmem:[%s2 + $0x68] sm:$0xff]
  %v215 = vld [vmem:[%s2 + $0x70] sm:$0xff]
  %v216 = vld [vmem:[%s2 + $0x78] sm:$0xff]
  %v217 = vld [vmem:[%s2 + $0x80] sm:$0xff]
  %v218 = vld [vmem:[%s2 + $0x88] sm:$0xff]
  %v219 = vld [vmem:[%s2 + $0x90] sm:$0xff]
  %v220 = vld [vmem:[%s2 + $0x98] sm:$0xff]
  %v221 = vld [vmem:[%s2 + $0xa0] sm:$0xff]
  %v222 = vld [vmem:[%s2 + $0xa8] sm:$0xff]
  %v223 = vld [vmem:[%s2 + $0xb0] sm:$0xff]
  %v224 = vld [vmem:[%s2 + $0xb8] sm:$0xff]
  %v225 = vld [vmem:[%s2 + $0xc0] sm:$0xff]
  %227 = vset.pattern.permute.xlu0 0
  %228 = vperm.xlu0 %227, %v201
  %v229 = vpop.permute.xlu0 %228
  %232 = vset.pattern.permute.xlu0 0
  %233 = vperm.xlu0 %232, %v202
  %v234 = vpop.permute.xlu0 %233
  %237 = vset.pattern.permute.xlu0 0
  %238 = vperm.xlu0 %237, %v203
  %v239 = vpop.permute.xlu0 %238
  %242 = vset.pattern.permute.xlu0 0
  %243 = vperm.xlu0 %242, %v204
  %v244 = vpop.permute.xlu0 %243
  %247 = vset.pattern.permute.xlu0 0
  %248 = vperm.xlu0 %247, %v205
  %v249 = vpop.permute.xlu0 %248
  %252 = vset.pattern.permute.xlu0 0
  %253 = vperm.xlu0 %252, %v206
  %v254 = vpop.permute.xlu0 %253
  %257 = vset.pattern.permute.xlu0 0
  %258 = vperm.xlu0 %257, %v207
  %v259 = vpop.permute.xlu0 %258
  %262 = vset.pattern.permute.xlu0 0
  %263 = vperm.xlu0 %262, %v208
  %v264 = vpop.permute.xlu0 %263
  %267 = vset.pattern.permute.xlu0 0
  %268 = vperm.xlu0 %267, %v209
  %v269 = vpop.permute.xlu0 %268
  %272 = vset.pattern.permute.xlu0 0
  %273 = vperm.xlu0 %272, %v210
  %v274 = vpop.permute.xlu0 %273
  %277 = vset.pattern.permute.xlu0 0
  %278 = vperm.xlu0 %277, %v211
  %v279 = vpop.permute.xlu0 %278
  %282 = vset.pattern.permute.xlu0 0
  %283 = vperm.xlu0 %282, %v212
  %v284 = vpop.permute.xlu0 %283
  %287 = vset.pattern.permute.xlu0 0
  %288 = vperm.xlu0 %287, %v213
  %v289 = vpop.permute.xlu0 %288
  %292 = vset.pattern.permute.xlu0 0
  %293 = vperm.xlu0 %292, %v214
  %v294 = vpop.permute.xlu0 %293
  %297 = vset.pattern.permute.xlu0 0
  %298 = vperm.xlu0 %297, %v215
  %v299 = vpop.permute.xlu0 %298
  %302 = vset.pattern.permute.xlu0 0
  %303 = vperm.xlu0 %302, %v216
  %v304 = vpop.permute.xlu0 %303
  %307 = vset.pattern.permute.xlu0 0
  %308 = vperm.xlu0 %307, %v217
  %v309 = vpop.permute.xlu0 %308
  %312 = vset.pattern.permute.xlu0 0
  %313 = vperm.xlu0 %312, %v218
  %v314 = vpop.permute.xlu0 %313
  %317 = vset.pattern.permute.xlu0 0
  %318 = vperm.xlu0 %317, %v219
  %v319 = vpop.permute.xlu0 %318
  %322 = vset.pattern.permute.xlu0 0
  %323 = vperm.xlu0 %322, %v220
  %v324 = vpop.permute.xlu0 %323
  %327 = vset.pattern.permute.xlu0 0
  %328 = vperm.xlu0 %327, %v221
  %v329 = vpop.permute.xlu0 %328
  %332 = vset.pattern.permute.xlu0 0
  %333 = vperm.xlu0 %332, %v222
  %v334 = vpop.permute.xlu0 %333
  %337 = vset.pattern.permute.xlu0 0
  %338 = vperm.xlu0 %337, %v223
  %v339 = vpop.permute.xlu0 %338
  %342 = vset.pattern.permute.xlu0 0
  %343 = vperm.xlu0 %342, %v224
  %v344 = vpop.permute.xlu0 %343
  %347 = vset.pattern.permute.xlu0 0
  %348 = vperm.xlu0 %347, %v225
  %v349 = vpop.permute.xlu0 %348
  %v351 = vadd.f32 %v176, %v229
  %v352 = vadd.f32 %v177, %v234
  %v353 = vadd.f32 %v178, %v239
  %v354 = vadd.f32 %v179, %v244
  %v355 = vadd.f32 %v180, %v249
  %v356 = vadd.f32 %v181, %v254
  %v357 = vadd.f32 %v182, %v259
  %v358 = vadd.f32 %v183, %v264
  %v359 = vadd.f32 %v184, %v269
  %v360 = vadd.f32 %v185, %v274
  %v361 = vadd.f32 %v186, %v279
  %v362 = vadd.f32 %v187, %v284
  %v363 = vadd.f32 %v188, %v289
  %v364 = vadd.f32 %v189, %v294
  %v365 = vadd.f32 %v190, %v299
  %v366 = vadd.f32 %v191, %v304
  %v367 = vadd.f32 %v192, %v309
  %v368 = vadd.f32 %v193, %v314
  %v369 = vadd.f32 %v194, %v319
  %v370 = vadd.f32 %v195, %v324
  %v371 = vadd.f32 %v196, %v329
  %v372 = vadd.f32 %v197, %v334
  %v373 = vadd.f32 %v198, %v339
  %v374 = vadd.f32 %v199, %v344
  %v375 = vadd.f32 %v200, %v349
  %v376 = vld [vmem:[%s0 + $0x1] sm:$0x1]
  %377 = vset.pattern.permute.xlu0 1
  %378 = vperm.xlu0 %377, %v21
  %v379 = vpop.permute.xlu0 %378
  %381 = vset.pattern.permute.xlu0 1
  %382 = vperm.xlu0 %381, %v22
  %v383 = vpop.permute.xlu0 %382
  %385 = vset.pattern.permute.xlu0 1
  %386 = vperm.xlu0 %385, %v23
  %v387 = vpop.permute.xlu0 %386
  %389 = vset.pattern.permute.xlu0 1
  %390 = vperm.xlu0 %389, %v24
  %v391 = vpop.permute.xlu0 %390
  %393 = vset.pattern.permute.xlu0 1
  %394 = vperm.xlu0 %393, %v25
  %v395 = vpop.permute.xlu0 %394
  %397 = vset.pattern.permute.xlu0 1
  %398 = vperm.xlu0 %397, %v26
  %v399 = vpop.permute.xlu0 %398
  %401 = vset.pattern.permute.xlu0 1
  %402 = vperm.xlu0 %401, %v27
  %v403 = vpop.permute.xlu0 %402
  %405 = vset.pattern.permute.xlu0 1
  %406 = vperm.xlu0 %405, %v28
  %v407 = vpop.permute.xlu0 %406
  %409 = vset.pattern.permute.xlu0 1
  %410 = vperm.xlu0 %409, %v29
  %v411 = vpop.permute.xlu0 %410
  %413 = vset.pattern.permute.xlu0 1
  %414 = vperm.xlu0 %413, %v30
  %v415 = vpop.permute.xlu0 %414
  %417 = vset.pattern.permute.xlu0 1
  %418 = vperm.xlu0 %417, %v31
  %v419 = vpop.permute.xlu0 %418
  %421 = vset.pattern.permute.xlu0 1
  %422 = vperm.xlu0 %421, %v32
  %v423 = vpop.permute.xlu0 %422
  %425 = vset.pattern.permute.xlu0 1
  %426 = vperm.xlu0 %425, %v33
  %v427 = vpop.permute.xlu0 %426
  %429 = vset.pattern.permute.xlu0 1
  %430 = vperm.xlu0 %429, %v34
  %v431 = vpop.permute.xlu0 %430
  %433 = vset.pattern.permute.xlu0 1
  %434 = vperm.xlu0 %433, %v35
  %v435 = vpop.permute.xlu0 %434
  %437 = vset.pattern.permute.xlu0 1
  %438 = vperm.xlu0 %437, %v36
  %v439 = vpop.permute.xlu0 %438
  %441 = vset.pattern.permute.xlu0 1
  %442 = vperm.xlu0 %441, %v37
  %v443 = vpop.permute.xlu0 %442
  %445 = vset.pattern.permute.xlu0 1
  %446 = vperm.xlu0 %445, %v38
  %v447 = vpop.permute.xlu0 %446
  %449 = vset.pattern.permute.xlu0 1
  %450 = vperm.xlu0 %449, %v39
  %v451 = vpop.permute.xlu0 %450
  %453 = vset.pattern.permute.xlu0 1
  %454 = vperm.xlu0 %453, %v40
  %v455 = vpop.permute.xlu0 %454
  %457 = vset.pattern.permute.xlu0 1
  %458 = vperm.xlu0 %457, %v41
  %v459 = vpop.permute.xlu0 %458
  %461 = vset.pattern.permute.xlu0 1
  %462 = vperm.xlu0 %461, %v42
  %v463 = vpop.permute.xlu0 %462
  %465 = vset.pattern.permute.xlu0 1
  %466 = vperm.xlu0 %465, %v43
  %v467 = vpop.permute.xlu0 %466
  %469 = vset.pattern.permute.xlu0 1
  %470 = vperm.xlu0 %469, %v44
  %v471 = vpop.permute.xlu0 %470
  %473 = vset.pattern.permute.xlu0 1
  %474 = vperm.xlu0 %473, %v45
  %v475 = vpop.permute.xlu0 %474
  %v477 = vlaneseq
  %v478 = vshrl.u32 %v477, 7
  %v479 = vsub.s32 0, %v478
  %v480 = vrot.slane %v376, %v479
  %v481 = vmul.f32 %v379, %v480
  %v482 = vmul.f32 %v383, %v480
  %v483 = vmul.f32 %v387, %v480
  %v484 = vmul.f32 %v391, %v480
  %v485 = vmul.f32 %v395, %v480
  %v486 = vmul.f32 %v399, %v480
  %v487 = vmul.f32 %v403, %v480
  %v488 = vmul.f32 %v407, %v480
  %v489 = vmul.f32 %v411, %v480
  %v490 = vmul.f32 %v415, %v480
  %v491 = vmul.f32 %v419, %v480
  %v492 = vmul.f32 %v423, %v480
  %v493 = vmul.f32 %v427, %v480
  %v494 = vmul.f32 %v431, %v480
  %v495 = vmul.f32 %v435, %v480
  %v496 = vmul.f32 %v439, %v480
  %v497 = vmul.f32 %v443, %v480
  %v498 = vmul.f32 %v447, %v480
  %v499 = vmul.f32 %v451, %v480
  %v500 = vmul.f32 %v455, %v480
  %v501 = vmul.f32 %v459, %v480
  %v502 = vmul.f32 %v463, %v480
  %v503 = vmul.f32 %v467, %v480
  %v504 = vmul.f32 %v471, %v480
  %v505 = vmul.f32 %v475, %v480
  %v506 = vadd.f32 %v351, %v481
  %v507 = vadd.f32 %v352, %v482
  %v508 = vadd.f32 %v353, %v483
  %v509 = vadd.f32 %v354, %v484
  %v510 = vadd.f32 %v355, %v485
  %v511 = vadd.f32 %v356, %v486
  %v512 = vadd.f32 %v357, %v487
  %v513 = vadd.f32 %v358, %v488
  %v514 = vadd.f32 %v359, %v489
  %v515 = vadd.f32 %v360, %v490
  %v516 = vadd.f32 %v361, %v491
  %v517 = vadd.f32 %v362, %v492
  %v518 = vadd.f32 %v363, %v493
  %v519 = vadd.f32 %v364, %v494
  %v520 = vadd.f32 %v365, %v495
  %v521 = vadd.f32 %v366, %v496
  %v522 = vadd.f32 %v367, %v497
  %v523 = vadd.f32 %v368, %v498
  %v524 = vadd.f32 %v369, %v499
  %v525 = vadd.f32 %v370, %v500
  %v526 = vadd.f32 %v371, %v501
  %v527 = vadd.f32 %v372, %v502
  %v528 = vadd.f32 %v373, %v503
  %v529 = vadd.f32 %v374, %v504
  %v530 = vadd.f32 %v375, %v505
  %v531 = vtanh.pop %v506
  %v532 = vtanh.pop %v507
  %v533 = vtanh.pop %v508
  %v534 = vtanh.pop %v509
  %v535 = vtanh.pop %v510
  %v536 = vtanh.pop %v511
  %v537 = vtanh.pop %v512
  %v538 = vtanh.pop %v513
  %v539 = vtanh.pop %v514
  %v540 = vtanh.pop %v515
  %v541 = vtanh.pop %v516
  %v542 = vtanh.pop %v517
  %v543 = vtanh.pop %v518
  %v544 = vtanh.pop %v519
  %v545 = vtanh.pop %v520
  %v546 = vtanh.pop %v521
  %v547 = vtanh.pop %v522
  %v548 = vtanh.pop %v523
  %v549 = vtanh.pop %v524
  %v550 = vtanh.pop %v525
  %v551 = vtanh.pop %v526
  %v552 = vtanh.pop %v527
  %v553 = vtanh.pop %v528
  %v554 = vtanh.pop %v529
  %v555 = vtanh.pop %v530
  %v556 = vld [vmem:[%s3] sm:$0xff]
  %v557 = vld [vmem:[%s3 + $0x8] sm:$0xff]
  %v558 = vld [vmem:[%s3 + $0x10] sm:$0xff]
  %v559 = vld [vmem:[%s3 + $0x18] sm:$0xff]
  %v560 = vld [vmem:[%s3 + $0x20] sm:$0xff]
  %v561 = vld [vmem:[%s3 + $0x28] sm:$0xff]
  %v562 = vld [vmem:[%s3 + $0x30] sm:$0xff]
  %v563 = vld [vmem:[%s3 + $0x38] sm:$0xff]
  %v564 = vld [vmem:[%s3 + $0x40] sm:$0xff]
  %v565 = vld [vmem:[%s3 + $0x48] sm:$0xff]
  %v566 = vld [vmem:[%s3 + $0x50] sm:$0xff]
  %v567 = vld [vmem:[%s3 + $0x58] sm:$0xff]
  %v568 = vld [vmem:[%s3 + $0x60] sm:$0xff]
  %v569 = vld [vmem:[%s3 + $0x68] sm:$0xff]
  %v570 = vld [vmem:[%s3 + $0x70] sm:$0xff]
  %v571 = vld [vmem:[%s3 + $0x78] sm:$0xff]
  %v572 = vld [vmem:[%s3 + $0x80] sm:$0xff]
  %v573 = vld [vmem:[%s3 + $0x88] sm:$0xff]
  %v574 = vld [vmem:[%s3 + $0x90] sm:$0xff]
  %v575 = vld [vmem:[%s3 + $0x98] sm:$0xff]
  %v576 = vld [vmem:[%s3 + $0xa0] sm:$0xff]
  %v577 = vld [vmem:[%s3 + $0xa8] sm:$0xff]
  %v578 = vld [vmem:[%s3 + $0xb0] sm:$0xff]
  %v579 = vld [vmem:[%s3 + $0xb8] sm:$0xff]
  %v580 = vld [vmem:[%s3 + $0xc0] sm:$0xff]
  %582 = vset.pattern.permute.xlu0 0
  %583 = vperm.xlu0 %582, %v556
  %v584 = vpop.permute.xlu0 %583
  %587 = vset.pattern.permute.xlu0 0
  %588 = vperm.xlu0 %587, %v557
  %v589 = vpop.permute.xlu0 %588
  %592 = vset.pattern.permute.xlu0 0
  %593 = vperm.xlu0 %592, %v558
  %v594 = vpop.permute.xlu0 %593
  %597 = vset.pattern.permute.xlu0 0
  %598 = vperm.xlu0 %597, %v559
  %v599 = vpop.permute.xlu0 %598
  %602 = vset.pattern.permute.xlu0 0
  %603 = vperm.xlu0 %602, %v560
  %v604 = vpop.permute.xlu0 %603
  %607 = vset.pattern.permute.xlu0 0
  %608 = vperm.xlu0 %607, %v561
  %v609 = vpop.permute.xlu0 %608
  %612 = vset.pattern.permute.xlu0 0
  %613 = vperm.xlu0 %612, %v562
  %v614 = vpop.permute.xlu0 %613
  %617 = vset.pattern.permute.xlu0 0
  %618 = vperm.xlu0 %617, %v563
  %v619 = vpop.permute.xlu0 %618
  %622 = vset.pattern.permute.xlu0 0
  %623 = vperm.xlu0 %622, %v564
  %v624 = vpop.permute.xlu0 %623
  %627 = vset.pattern.permute.xlu0 0
  %628 = vperm.xlu0 %627, %v565
  %v629 = vpop.permute.xlu0 %628
  %632 = vset.pattern.permute.xlu0 0
  %633 = vperm.xlu0 %632, %v566
  %v634 = vpop.permute.xlu0 %633
  %637 = vset.pattern.permute.xlu0 0
  %638 = vperm.xlu0 %637, %v567
  %v639 = vpop.permute.xlu0 %638
  %642 = vset.pattern.permute.xlu0 0
  %643 = vperm.xlu0 %642, %v568
  %v644 = vpop.permute.xlu0 %643
  %647 = vset.pattern.permute.xlu0 0
  %648 = vperm.xlu0 %647, %v569
  %v649 = vpop.permute.xlu0 %648
  %652 = vset.pattern.permute.xlu0 0
  %653 = vperm.xlu0 %652, %v570
  %v654 = vpop.permute.xlu0 %653
  %657 = vset.pattern.permute.xlu0 0
  %658 = vperm.xlu0 %657, %v571
  %v659 = vpop.permute.xlu0 %658
  %662 = vset.pattern.permute.xlu0 0
  %663 = vperm.xlu0 %662, %v572
  %v664 = vpop.permute.xlu0 %663
  %667 = vset.pattern.permute.xlu0 0
  %668 = vperm.xlu0 %667, %v573
  %v669 = vpop.permute.xlu0 %668
  %672 = vset.pattern.permute.xlu0 0
  %673 = vperm.xlu0 %672, %v574
  %v674 = vpop.permute.xlu0 %673
  %677 = vset.pattern.permute.xlu0 0
  %678 = vperm.xlu0 %677, %v575
  %v679 = vpop.permute.xlu0 %678
  %682 = vset.pattern.permute.xlu0 0
  %683 = vperm.xlu0 %682, %v576
  %v684 = vpop.permute.xlu0 %683
  %687 = vset.pattern.permute.xlu0 0
  %688 = vperm.xlu0 %687, %v577
  %v689 = vpop.permute.xlu0 %688
  %692 = vset.pattern.permute.xlu0 0
  %693 = vperm.xlu0 %692, %v578
  %v694 = vpop.permute.xlu0 %693
  %697 = vset.pattern.permute.xlu0 0
  %698 = vperm.xlu0 %697, %v579
  %v699 = vpop.permute.xlu0 %698
  %702 = vset.pattern.permute.xlu0 0
  %703 = vperm.xlu0 %702, %v580
  %v704 = vpop.permute.xlu0 %703
  %v706 = vmul.f32 %v531, %v584
  %v707 = vmul.f32 %v532, %v589
  %v708 = vmul.f32 %v533, %v594
  %v709 = vmul.f32 %v534, %v599
  %v710 = vmul.f32 %v535, %v604
  %v711 = vmul.f32 %v536, %v609
  %v712 = vmul.f32 %v537, %v614
  %v713 = vmul.f32 %v538, %v619
  %v714 = vmul.f32 %v539, %v624
  %v715 = vmul.f32 %v540, %v629
  %v716 = vmul.f32 %v541, %v634
  %v717 = vmul.f32 %v542, %v639
  %v718 = vmul.f32 %v543, %v644
  %v719 = vmul.f32 %v544, %v649
  %v720 = vmul.f32 %v545, %v654
  %v721 = vmul.f32 %v546, %v659
  %v722 = vmul.f32 %v547, %v664
  %v723 = vmul.f32 %v548, %v669
  %v724 = vmul.f32 %v549, %v674
  %v725 = vmul.f32 %v550, %v679
  %v726 = vmul.f32 %v551, %v684
  %v727 = vmul.f32 %v552, %v689
  %v728 = vmul.f32 %v553, %v694
  %v729 = vmul.f32 %v554, %v699
  %v730 = vmul.f32 %v555, %v704
  %v731 = vadd.f32 %v706, %v707
  %v732 = vadd.f32 %v731, %v708
  %v733 = vadd.f32 %v732, %v709
  %v734 = vadd.f32 %v733, %v710
  %v735 = vadd.f32 %v734, %v711
  %v736 = vadd.f32 %v735, %v712
  %v737 = vadd.f32 %v736, %v713
  %v738 = vadd.f32 %v737, %v714
  %v739 = vadd.f32 %v738, %v715
  %v740 = vadd.f32 %v739, %v716
  %v741 = vadd.f32 %v740, %v717
  %v742 = vadd.f32 %v741, %v718
  %v743 = vadd.f32 %v742, %v719
  %v744 = vadd.f32 %v743, %v720
  %v745 = vadd.f32 %v744, %v721
  %v746 = vadd.f32 %v745, %v722
  %v747 = vadd.f32 %v746, %v723
  %v748 = vadd.f32 %v747, %v724
  %v749 = vadd.f32 %v748, %v725
  %v750 = vadd.f32 %v749, %v726
  %v751 = vadd.f32 %v750, %v727
  %v752 = vadd.f32 %v751, %v728
  %v753 = vadd.f32 %v752, %v729
  %v754 = vadd.f32 %v753, %v730
  %v755 = vrot.slane %v754, 4
  %v756 = vadd.f32 %v754, %v755
  %v757 = vrot.slane %v756, 2
  %v758 = vadd.f32 %v756, %v757
  %v759 = vrot.slane %v758, 1
  %v760 = vadd.f32 %v758, %v759
  %s761 = sld [smem:[#allocation2]]
  %v762 = vstv %s761
  %v763 = vadd.f32 %v760, %v762
  %764 = vst [vmem:[%s5] sm:$0x1] %v763
  // Predicated region
  $region22: #{_decoder_forward_batch_major.1} parent=0 // pred_check
    _
  $region23: #{_decoder_forward_batch_major.1} parent=0 // pred_check_branch
    %766 = sbr.rel (0) target = $region25
  $region24: #{_decoder_forward_batch_major.1} parent=0 // pred_region
    _
  $region25: #{_decoder_forward_batch_major.1} parent=0 // pred_fallthru
    _
  // Predicated region
  $region26: #{_decoder_forward_batch_major.1} parent=0 // pred_check
    _
  $region27: #{_decoder_forward_batch_major.1} parent=0 // pred_check_branch
    %768 = sbr.rel (0) target = $region29
  $region28: #{_decoder_forward_batch_major.1} parent=0 // pred_region
    _
  $region29: #{_decoder_forward_batch_major.1} parent=0 // pred_fallthru
    _

</llo_original>
